<compile_context>
chip_gen: v5e
topology: v5e:2x2
jax: 0.10.0
libtpu: 0.0.40
codegen_flags: <defaults>
</compile_context>

<pallas_src>
import jax
import jax.numpy as jnp
from jax.experimental import pallas as pl
from jax.experimental.pallas import tpu as pltpu

RESNET_DIM = 2048    # hardcoded in the module: hidden_size + 2048
HIDDEN_SIZE = 32     # yolo.config.hidden_size (small, synthetic)
NUM_CLASSES = 5

LANE = 128
SUBLANE = 8
OUT_PAD = 128                      # lane-dense padded logits width
MAX_B_TILE = 8                     # batch rows per grid step (amortize 0.35us/step)
VMEM_INPUT_BUDGET = 4 * 1024 * 1024  # per pipeline buffer (double-buffered by Pallas)


def _cdiv(a, b):
    return (a + b - 1) // b


def _round_up(x, m):
    return _cdiv(x, m) * m


def _largest_divisor_leq(n, cap):
    for d in range(min(n, cap), 0, -1):
        if n % d == 0:
            return d
    return 1


def _pooled_classifier_kernel(px_ref, wf_ref, bf_ref, out_ref, acc_ref):
    """Streaming spatial sum + fused classifier GEMV.

    px_ref : (B_TILE, C, S_TILE)   pixel stream (f32 or bf16)
    wf_ref : (C, OUT_PAD)          fused weight (1/(H*W) folded in)
    bf_ref : (1, OUT_PAD)          fused bias
    out_ref: (B_TILE, 1, OUT_PAD)  lane-dense padded logits
    acc_ref: (B_TILE, C)           f32 running spatial sum (VMEM scratch)
    """
    s = pl.program_id(1)

    @pl.when(s == 0)
    def _init():
        acc_ref[...] = jnp.zeros_like(acc_ref)

    # XLU lane-reduce per step; accumulate in f32 (safe even for bf16 streams).
    acc_ref[...] += jnp.sum(px_ref[...].astype(jnp.float32), axis=-1)

    @pl.when(s == pl.num_programs(1) - 1)
    def _finalize():
        logits = (
            jnp.dot(acc_ref[...], wf_ref[...], preferred_element_type=jnp.float32)
            + bf_ref[...]
        )
        out_ref[:, 0, :] = logits.astype(out_ref.dtype)


def init_params(key, channels):
    """Deterministic synthetic parameters (module __init__ shapes)."""
    ks = jax.random.split(key, 6)
    scale = 0.02
    return {
        # synthetic backbone projections (stand-ins for external submodules)
        "w_res": scale * jax.random.normal(ks[0], (channels, RESNET_DIM), jnp.float32),
        "b_res": scale * jax.random.normal(ks[1], (1, RESNET_DIM), jnp.float32),
        "w_yolo": scale * jax.random.normal(ks[2], (channels, HIDDEN_SIZE), jnp.float32),
        "b_yolo": scale * jax.random.normal(ks[3], (1, HIDDEN_SIZE), jnp.float32),
        # nn.Linear(hidden_size + 2048, 5)
        "w_cls": scale * jax.random.normal(
            ks[4], (RESNET_DIM + HIDDEN_SIZE, NUM_CLASSES), jnp.float32),
        "b_cls": scale * jax.random.normal(ks[5], (1, NUM_CLASSES), jnp.float32),
    }


def _fuse_params(params, spatial_size, channels):
    """Exact algebraic fold of the all-linear pipeline into (C,128)+(1,128).

    logits = (mean_s(px) @ w_res + b_res) @ w_cls[:2048]
           + (mean_s(px) @ w_yolo + b_yolo) @ w_cls[2048:] + b_cls
           = sum_s(px) @ W_fused + b_fused
    The row-split of w_cls is mathematically identical to torch.cat + Linear;
    the 1/(H*W) mean normalization is folded into W_fused exactly once.
    """
    w_cls_img = params["w_cls"][:RESNET_DIM, :]      # (2048, 5)
    w_cls_yolo = params["w_cls"][RESNET_DIM:, :]     # (HIDDEN, 5)
    w_fused = (params["w_res"] @ w_cls_img
               + params["w_yolo"] @ w_cls_yolo) / jnp.float32(spatial_size)  # (C, 5)
    b_fused = (params["b_res"] @ w_cls_img
               + params["b_yolo"] @ w_cls_yolo
               + params["b_cls"])                                            # (1, 5)

    w_padded = jnp.zeros((channels, OUT_PAD), jnp.float32)
    w_padded = w_padded.at[:, :NUM_CLASSES].set(w_fused)
    b_padded = jnp.zeros((1, OUT_PAD), jnp.float32)
    b_padded = b_padded.at[:, :NUM_CLASSES].set(b_fused)
    return w_padded, b_padded


def yolo_resnet_forward(params, pixel_values, labels=None,
                        vmem_budget_bytes=VMEM_INPUT_BUDGET):
    """pixel_values: (B, C, H, W) float (NCHW, PyTorch convention)."""
    # TODO(synk): the real YOLO/OwL-ViT transformer, ResNet trunk and the HF
    # image processor (do_rescale=False) are external submodules; they are
    # represented by the synthetic pooled linear projections folded above.
    B, C, H, W = pixel_values.shape
    S = H * W
    px = pixel_values.reshape(B, C, S)          # free (contiguous) reshape

    c_rows = _round_up(C, SUBLANE)              # VMEM rounds channels to 8 sublanes
    s_lanes = _round_up(S, LANE)
    itemsize = jnp.dtype(px.dtype).itemsize

    def fits(bt, st):
        return bt * c_rows * st * itemsize <= vmem_budget_bytes

    # Prefer shrinking the batch tile over tiling (and padding) the spatial axis.
    b_tile = _largest_divisor_leq(B, MAX_B_TILE)
    while b_tile > 1 and not fits(b_tile, s_lanes):
        b_tile = _largest_divisor_leq(B, b_tile - 1)

    if fits(b_tile, s_lanes):
        s_tile, s_padded = S, S                 # full-extent block: no padding at all
    else:
        cap = max(LANE, (vmem_budget_bytes // (b_tile * c_rows * itemsize))
                  // LANE * LANE)
        n_steps = _cdiv(S, cap)
        s_tile = _round_up(_cdiv(S, n_steps), LANE)
        s_padded = n_steps * s_tile
        if s_padded != S:                       # zeros don't affect the spatial sum
            px = jnp.pad(px, ((0, 0), (0, 0), (0, s_padded - S)))

    w_fused, b_fused = _fuse_params(params, S, C)

    grid = (B // b_tile, s_padded // s_tile)

    out_padded = pl.pallas_call(
        _pooled_classifier_kernel,
        out_shape=jax.ShapeDtypeStruct((B, 1, OUT_PAD), jnp.float32),
        grid_spec=pltpu.PrefetchScalarGridSpec(
            num_scalar_prefetch=0,
            grid=grid,
            in_specs=[
                pl.BlockSpec((b_tile, C, s_tile), lambda b, s: (b, 0, s)),
                pl.BlockSpec((C, OUT_PAD), lambda b, s: (0, 0)),
                pl.BlockSpec((1, OUT_PAD), lambda b, s: (0, 0)),
            ],
            out_specs=pl.BlockSpec((b_tile, 1, OUT_PAD), lambda b, s: (b, 0, 0)),
            scratch_shapes=[pltpu.VMEM((b_tile, C), jnp.float32)],
        ),
        compiler_params=pltpu.CompilerParams(
            dimension_semantics=("parallel", "arbitrary"),
            vmem_limit_bytes=32 * 1024 * 1024,
        ),
    )(px, w_fused, b_fused)

    logits = out_padded[:, 0, :NUM_CLASSES]

    if labels is not None:
        # torch.nn.CrossEntropyLoss (mean reduction) — glue in plain JAX.
        log_probs = jax.nn.log_softmax(logits, axis=-1)
        loss = -jnp.mean(jnp.take_along_axis(log_probs, labels[:, None], axis=-1))
        return loss, logits
    return logits


def yolo_resnet_reference(params, pixel_values):
    """Pure-JAX reference mirroring the un-fused module math (for validation)."""
    B, C, H, W = pixel_values.shape
    px = pixel_values.astype(jnp.float32).reshape(B, C, H * W)
    pooled = jnp.mean(px, axis=-1)
    img_emb = pooled @ params["w_res"] + params["b_res"]
    yolo_emb = pooled @ params["w_yolo"] + params["b_yolo"]
    full = jnp.concatenate([img_emb, yolo_emb], axis=1)
    return full @ params["w_cls"] + params["b_cls"]


if __name__ == "__main__":
    key = jax.random.PRNGKey(0)
    k_params, k_px, k_lbl, k_px2, k_px3 = jax.random.split(key, 5)

    B, C, H, W = 2, 3, 16, 16
    pixel_values = jax.random.uniform(k_px, (B, C, H, W), jnp.float32)
    labels = jax.random.randint(k_lbl, (B,), 0, NUM_CLASSES)
    params = init_params(k_params, C)

    logits = jax.block_until_ready(yolo_resnet_forward(params, pixel_values))
    ref = yolo_resnet_reference(params, pixel_values)
    assert logits.shape == (B, NUM_CLASSES)
    assert jnp.allclose(logits, ref, rtol=1e-3, atol=1e-5)

    loss, logits2 = yolo_resnet_forward(params, pixel_values, labels)
    jax.block_until_ready((loss, logits2))
    assert logits2.shape == (B, NUM_CLASSES) and loss.shape == ()

    # Larger image / batch: multi-element batch tile, single full-extent
    # spatial block (zero wrapper-side copies).
    B2, H2, W2 = 4, 64, 64
    px2 = jax.random.uniform(k_px2, (B2, C, H2, W2), jnp.float32)
    logits3 = jax.block_until_ready(yolo_resnet_forward(params, px2))
    ref3 = yolo_resnet_reference(params, px2)
    assert logits3.shape == (B2, NUM_CLASSES)
    assert jnp.allclose(logits3, ref3, rtol=1e-3, atol=1e-5)

    # Tiny VMEM budget forces the streaming spatial path: multi-step
    # accumulator ('arbitrary' axis), ragged spatial size and zero padding.
    B3, H3, W3 = 2, 40, 40
    px3 = jax.random.uniform(k_px3, (B3, C, H3, W3), jnp.float32)
    logits4 = jax.block_until_ready(
        yolo_resnet_forward(params, px3, vmem_budget_bytes=16 * 1024))
    ref4 = yolo_resnet_reference(params, px3)
    assert logits4.shape == (B3, NUM_CLASSES)
    assert jnp.allclose(logits4, ref4, rtol=1e-3, atol=1e-5)

    print("KERNEL_OK")
</pallas_src>

<mosaic_0001>
module attributes {stable_mosaic.version = 11 : i64} {
  func.func @_pooled_classifier_kernel(%arg0: i32, %arg1: i32, %arg2: memref<2x3x256xf32, #tpu.memory_space<vmem>>, %arg3: memref<3x128xf32, #tpu.memory_space<vmem>>, %arg4: memref<1x128xf32, #tpu.memory_space<vmem>>, %arg5: memref<2x1x128xf32, #tpu.memory_space<vmem>>, %arg6: memref<2x3xf32, #tpu.memory_space<vmem>>) attributes {dimension_semantics = [#tpu.dimension_semantics<parallel>, #tpu.dimension_semantics<arbitrary>], iteration_bounds = array<i64: 1, 1>, scalar_prefetch = 0 : i64, scratch_operands = 1 : i64, tpu.core_type = #tpu.core_type<tc>, window_params = [{transform_indices = @transform_0, window_bounds = array<i64: 2, 3, 256>}, {pipeline_mode = #tpu.pipeline_mode<synchronous>, transform_indices = @transform_1, window_bounds = array<i64: 3, 128>}, {pipeline_mode = #tpu.pipeline_mode<synchronous>, transform_indices = @transform_2, window_bounds = array<i64: 1, 128>}, {transform_indices = @transform_3, window_bounds = array<i64: 2, 1, 128>}]} {
    %c0_i32 = arith.constant 0 : i32
    %0 = arith.cmpi eq, %arg1, %c0_i32 : i32
    %1 = arith.extui %0 : i1 to i32
    %c0_i32_0 = arith.constant 0 : i32
    %2 = arith.cmpi ne, %1, %c0_i32_0 : i32
    scf.if %2 {
      %cst_9 = arith.constant 0.000000e+00 : f32
      %11 = vector.broadcast %cst_9 : f32 to vector<2x3xf32>
      %c0_10 = arith.constant 0 : index
      %c0_11 = arith.constant 0 : index
      %12 = vector.load %arg6[%c0_10, %c0_11] : memref<2x3xf32, #tpu.memory_space<vmem>>, vector<2x3xf32>
      tpu.vector_store %arg6[%c0_10, %c0_11], %11 {strides = array<i32>} : memref<2x3xf32, #tpu.memory_space<vmem>>, vector<2x3xf32>,
    } else {
    }
    %c0 = arith.constant 0 : index
    %c0_1 = arith.constant 0 : index
    %3 = vector.load %arg6[%c0, %c0_1] : memref<2x3xf32, #tpu.memory_space<vmem>>, vector<2x3xf32>
    %c0_2 = arith.constant 0 : index
    %c0_3 = arith.constant 0 : index
    %c0_4 = arith.constant 0 : index
    %4 = vector.load %arg2[%c0_2, %c0_3, %c0_4] : memref<2x3x256xf32, #tpu.memory_space<vmem>>, vector<2x3x256xf32>
    %cst = arith.constant dense<0.000000e+00> : vector<2x3xf32>
    %5 = vector.multi_reduction <add>, %4, %cst [2] : vector<2x3x256xf32> to vector<2x3xf32>
    %6 = arith.addf %3, %5 : vector<2x3xf32>
    %c0_5 = arith.constant 0 : index
    %c0_6 = arith.constant 0 : index
    %7 = vector.load %arg6[%c0_5, %c0_6] : memref<2x3xf32, #tpu.memory_space<vmem>>, vector<2x3xf32>
    tpu.vector_store %arg6[%c0_5, %c0_6], %6 {strides = array<i32>} : memref<2x3xf32, #tpu.memory_space<vmem>>, vector<2x3xf32>,
    %c0_i32_7 = arith.constant 0 : i32
    %8 = arith.cmpi eq, %arg1, %c0_i32_7 : i32
    %9 = arith.extui %8 : i1 to i32
    %c0_i32_8 = arith.constant 0 : i32
    %10 = arith.cmpi ne, %9, %c0_i32_8 : i32
    scf.if %10 {
      %c0_9 = arith.constant 0 : index
      %c0_10 = arith.constant 0 : index
      %11 = vector.load %arg6[%c0_9, %c0_10] : memref<2x3xf32, #tpu.memory_space<vmem>>, vector<2x3xf32>
      %c0_11 = arith.constant 0 : index
      %c0_12 = arith.constant 0 : index
      %12 = vector.load %arg3[%c0_11, %c0_12] : memref<3x128xf32, #tpu.memory_space<vmem>>, vector<3x128xf32>
      %cst_13 = arith.constant dense<0.000000e+00> : vector<2x128xf32>
      %13 = tpu.matmul %11, %12, %cst_13 {dimension_numbers = #tpu.dot_dimension_numbers<[1], [0], [0], [1], [0, 0, 1, 1], [], []>} : vector<2x3xf32>, vector<3x128xf32>, vector<2x128xf32> -> vector<2x128xf32>
      %c0_14 = arith.constant 0 : index
      %c0_15 = arith.constant 0 : index
      %14 = vector.load %arg4[%c0_14, %c0_15] : memref<1x128xf32, #tpu.memory_space<vmem>>, vector<1x128xf32>
      %15 = vector.broadcast %14 : vector<1x128xf32> to vector<2x128xf32>
      %16 = arith.addf %13, %15 : vector<2x128xf32>
      %c0_16 = arith.constant 0 : index
      %c0_17 = arith.constant 0 : index
      %c0_18 = arith.constant 0 : index
      %17 = vector.load %arg5[%c0_16, %c0_17, %c0_18] : memref<2x1x128xf32, #tpu.memory_space<vmem>>, vector<2x1x128xf32>
      %18 = vector.shape_cast %17 : vector<2x1x128xf32> to vector<2x128xf32>
      %19 = vector.shape_cast %16 : vector<2x128xf32> to vector<2x1x128xf32>
      tpu.vector_store %arg5[%c0_16, %c0_17, %c0_18], %19 {strides = array<i32>} : memref<2x1x128xf32, #tpu.memory_space<vmem>>, vector<2x1x128xf32>,
    } else {
    }
    return
  }
  func.func @transform_0(%arg0: i32, %arg1: i32) -> (i32, i32, i32) {
    %c0_i32 = arith.constant 0 : i32
    %c0_i32_0 = arith.constant 0 : i32
    return %arg0, %c0_i32, %arg1 : i32, i32, i32
  }
  func.func @transform_1(%arg0: i32, %arg1: i32) -> (i32, i32) {
    %c0_i32 = arith.constant 0 : i32
    %c0_i32_0 = arith.constant 0 : i32
    %c0_i32_1 = arith.constant 0 : i32
    return %c0_i32, %c0_i32_0 : i32, i32
  }
  func.func @transform_2(%arg0: i32, %arg1: i32) -> (i32, i32) {
    %c0_i32 = arith.constant 0 : i32
    %c0_i32_0 = arith.constant 0 : i32
    %c0_i32_1 = arith.constant 0 : i32
    return %c0_i32, %c0_i32_0 : i32, i32
  }
  func.func @transform_3(%arg0: i32, %arg1: i32) -> (i32, i32, i32) {
    %c0_i32 = arith.constant 0 : i32
    %c0_i32_0 = arith.constant 0 : i32
    %c0_i32_1 = arith.constant 0 : i32
    return %arg0, %c0_i32, %c0_i32_0 : i32, i32, i32
  }
}

</mosaic_0001>

<llo_original>
// kernel: tpu_custom_call.1
$region0: #{tpu_custom_call.1}
  #allocation0 [shape = 'u32[]', space=smem, size = 0x4, offset = 0x4, fixed_abs, tag = 'smem constant byte address 0x4 - core index']
  #allocation1 [shape = 'u32[72,128]{1,0:T(1,128)}', space=vmem, size = 0x9000, scoped, tag = 'internal scratch']
  #allocation2 [shape = 'f32[2,3]{1,0:T(2,128)}', space=vmem, size = 0x400, scoped, tag = 'scratch operand']
  %s0 = inlined_call_operand.vmem [shape: f32[2,3,256], index: 0, kind: input, shape index: {}]
  %s1 = inlined_call_operand.vmem [shape: f32[3,128], index: 1, kind: input, shape index: {}]
  %s2 = inlined_call_operand.vmem [shape: f32[1,128], index: 2, kind: input, shape index: {}]
  %s3 = inlined_call_operand.hbm [shape: f32[2,1,128], index: 3, kind: output, shape index: {}]
  %s4 = sld [smem:[#allocation0]]
  $region30: #{tpu_custom_call.1} parent=0
    _
  %s6 = ssub.s32 1, %s4
  %s7 = scalar_select 0, %s6, %s4
  $region1: #{tpu_custom_call.1} parent=0
    #allocation3 [shape = 'u8[1024]{0}', space=vmem, size = 0x400, scoped, tag = 'output window, operand 0, single buffered']
    #allocation4 [shape = 's32[1]{0}', space=sflag, size = 0x4, scoped, tag = 'scoped memory for tpu_custom_call.1']
    %8 = vsyncpa [#allocation4], 0
    // Predicated region
    $region2: #{tpu_custom_call.1} parent=1 // pred_check
      _
    $region3: #{tpu_custom_call.1} parent=1 // pred_check_branch
      %10 = sbr.rel (0) target = $region5
    $region4: #{tpu_custom_call.1} parent=1 // pred_region
      _
    $region5: #{tpu_custom_call.1} parent=1 // pred_fallthru
      _
    // Predicated region
    $region6: #{tpu_custom_call.1} parent=1 // pred_check
      _
    $region7: #{tpu_custom_call.1} parent=1 // pred_check_branch
      %12 = sbr.rel (0) target = $region9
    $region8: #{tpu_custom_call.1} parent=1 // pred_region
      _
    $region9: #{tpu_custom_call.1} parent=1 // pred_fallthru
      _
    // Predicated region
    $region10: #{tpu_custom_call.1} parent=1 // pred_check
      _
    $region11: #{tpu_custom_call.1} parent=1 // pred_check_branch
      %14 = sbr.rel (0) target = $region13
    $region12: #{tpu_custom_call.1} parent=1 // pred_region
      _
    $region13: #{tpu_custom_call.1} parent=1 // pred_fallthru
      _
    %p15 = scmp.eq.s32.totalorder 0, 0
    // Predicated region
    $region14: #{tpu_custom_call.1} parent=1 // pred_check
      %p16 = pneg %p15
    $region15: #{tpu_custom_call.1} parent=1 // pred_check_branch
      %18 = sbr.rel (%p16) target = $region17
    $region16: #{tpu_custom_call.1} parent=1 // pred_region
      %vm19 = vcmask 17408
      %20 = vst.msk [vmem:[#allocation2] sm:$0x3] %vm19, 0.0
    $region17: #{tpu_custom_call.1} parent=1 // pred_fallthru
      _
    %v21 = vld [vmem:[#allocation2] sm:$0x3]
    %v22 = vld [vmem:[%s0] sm:$0x77]
    %v23 = vld [vmem:[%s0 + $0x8] sm:$0x77]
    %26 = vst [vmem:[#allocation1] ss:$2 sm:$0xff] %v22
    %v27 = vld.sshfl [vmem:[#allocation1] sm:$0xff pattern:$0x75316420]
    %v28 = vld.sshfl [vmem:[#allocation1 + $0x8] sm:$0xff pattern:$0x75316420]
    %s29 = scalar_lea.vmem [#allocation1], 16
    %30 = vst [vmem:[%s29] ss:$2 sm:$0xff] %v23
    %v31 = vld.sshfl [vmem:[#allocation1 + $0x10] sm:$0xff pattern:$0x75316420]
    %v32 = vld.sshfl [vmem:[#allocation1 + $0x18] sm:$0xff pattern:$0x75316420]
    %vm37 = vcmask 1042432
    %v38 = vsel %vm37, %v27, 0.0
    %v39 = vsel %vm37, %v28, 0.0
    %v40 = vadd.f32 %v38, %v39
    %41 = vadd.xlane.f32.xlu0 %v40
    %v42 = vpop.xlane.xlu0 %41
    %v43 = vsel %vm37, %v31, 0.0
    %v44 = vsel %vm37, %v32, 0.0
    %v45 = vadd.f32 %v43, %v44
    %46 = vadd.xlane.f32.xlu0 %v45
    %v47 = vpop.xlane.xlu0 %46
    %v50 = vlaneseq
    %v51 = vand.u32 %v50, 127
    %v52 = vperm.slane %v42, %v51
    %v53 = vperm.slane %v47, %v51
    %vm54 = vcmask 1041409
    %v55 = vsel %vm54, %v53, %v52
    %v57 = vadd.f32 %v21, %v55
    %vm58 = vcmask 17408
    %59 = vst.msk [vmem:[#allocation2] sm:$0x3] %vm58, %v57
    // Predicated region
    $region18: #{tpu_custom_call.1} parent=1 // pred_check
      %p60 = pneg %p15
    $region19: #{tpu_custom_call.1} parent=1 // pred_check_branch
      %62 = sbr.rel (%p60) target = $region21
    $region20: #{tpu_custom_call.1} parent=1 // pred_region
      %v63 = vld [vmem:[#allocation2] sm:$0x3]
      %v64 = vld [vmem:[%s1] sm:$0x7]
      %v65 = vld [vmem:[%s2] sm:$0x1]
      %v67 = vperm.slane %v65, 0
      %vm69 = vcmask 23552
      %v71 = vsel %vm69, %v63, 0
      %v74 = vsel %vm37, %v64, 0
      %76 = vmatpush.msra.mxu0 0.0
      %77 = vmatpush.msra.mxu0 0.0
      %78 = vmatpush.msra.mxu0 0.0
      %79 = vmatpush.msra.mxu0 0.0
      %80 = vmatpush.msra.mxu0 0.0
      %81 = vmatpush.msra.mxu0 0.0
      %82 = vmatpush.msra.mxu0 0.0
      %83 = vmatpush.msra.mxu0 0.0
      %84 = vmatpush.msra.mxu0 0.0
      %85 = vmatpush.msra.mxu0 0.0
      %86 = vmatpush.msra.mxu0 0.0
      %87 = vmatpush.msra.mxu0 0.0
      %88 = vmatpush.msra.mxu0 0.0
      %89 = vmatpush.msra.mxu0 0.0
      %90 = vmatpush.msra.mxu0 0.0
      %91 = vmatpush.msra.mxu0 %v74
      %92 = vmatmul.f32.gmra.mxu0 %v71
      %v93 = vpop.f32.mrf.mxu0
      %v94 = vadd.f32 %v67, %v93
      %95 = vdwg.mxu0
      %v97 = vrot.slane %v94, 1
      %99 = vst [vmem:[#allocation3] sm:$0x1] %v94
      %100 = vst [vmem:[#allocation3 + $0x1] sm:$0x1] %v97
    $region21: #{tpu_custom_call.1} parent=1 // pred_fallthru
      _
    // Predicated region
    $region22: #{tpu_custom_call.1} parent=1 // pred_check
      _
    $region23: #{tpu_custom_call.1} parent=1 // pred_check_branch
      %102 = sbr.rel (0) target = $region25
    $region24: #{tpu_custom_call.1} parent=1 // pred_region
      %104 = vsyncadd [#allocation4], 0
      %s105 = sshll.u32 [#allocation3], 4
      %s106 = int_to_ptr.vmem [resolvable:$true] %s105
      %s107 = sshll.u32 %s3, 4
      %s108 = int_to_ptr.hbm [resolvable:$true] %s107
      %113 = dma.vmem_to_hbm [thread:$0]  %s106, 32, %s108, [#allocation4], 16, 16, 1
    $region25: #{tpu_custom_call.1} parent=1 // pred_fallthru
      _
    // Predicated region
    $region26: #{tpu_custom_call.1} parent=1 // pred_check
      _
    $region27: #{tpu_custom_call.1} parent=1 // pred_check_branch
      %115 = sbr.rel (0) target = $region29
    $region28: #{tpu_custom_call.1} parent=1 // pred_region
      %117 = dma.done [#allocation4], 32
    $region29: #{tpu_custom_call.1} parent=1 // pred_fallthru
      _
    %118 = vsyncpa [#allocation4], 1

</llo_original>
